<compile_context>
chip_gen: v5e
topology: v5e:2x2
jax: 0.10.0
libtpu: 0.0.40
codegen_flags: <defaults>
</compile_context>

<pallas_src>
import math
from functools import partial

import jax
import jax.numpy as jnp
from jax.experimental import pallas as pl
from jax.experimental.pallas import tpu as pltpu


_KERNEL_SIZES = ((1, 1), (3, 3), (5, 5), (7, 7), (1, 5), (5, 1))
_KH = max(s[0] for s in _KERNEL_SIZES)   # 7
_KW = max(s[1] for s in _KERNEL_SIZES)   # 7


def _sum_conv_kernel(x_ref, w_ref, b_ref, o_ref, xpad_ref,
                     *, H, W, KH, KW, PH, PW):
    """One batch element x one Cout tile of the fused KHxKW 'same' conv.

    x_ref    : (1, H, W, Cin)          unpadded NHWC input block
    w_ref    : (KH, KW*Cin, Tco)       fused weight, per-row (kw-major, c-minor)
    b_ref    : (1, Tco)                fused bias
    o_ref    : (1, H*W, Tco)           output, spatial flattened row-major
    xpad_ref : (H+KH-1, W+KW-1, Cin)   VMEM scratch holding the padded image
    """
    c_in = x_ref.shape[-1]
    t_co = o_ref.shape[-1]
    hp = H + KH - 1

    # Fill the zero-padded image once per batch element (the x block only
    # changes with the batch grid axis; the Cout-tile axis is "arbitrary").
    @pl.when(pl.program_id(1) == 0)
    def _():
        xpad_ref[...] = jnp.zeros_like(xpad_ref)
        xpad_ref[PH:PH + H, PW:PW + W, :] = x_ref[0]

    # Partial im2col over the kernel-width axis:
    #   xcat[(h*W + w) + kh*W, kw*Cin + c] == x_pad[h+kh, w+kw, c]
    cols = [
        xpad_ref[:, kw:kw + W, :].reshape(hp * W, c_in)
        for kw in range(KW)
    ]
    xcat = jnp.concatenate(cols, axis=-1)                 # (Hp*W, KW*Cin)

    acc = jnp.zeros((H * W, t_co), dtype=jnp.float32)
    for kh in range(KH):
        patch = xcat[kh * W:kh * W + H * W, :]            # (H*W, KW*Cin)
        acc = acc + jnp.dot(patch, w_ref[kh],
                            preferred_element_type=jnp.float32)

    acc = acc + b_ref[...].astype(jnp.float32)
    o_ref[0] = acc.astype(o_ref.dtype)


def _pick_cout_tile(c_out: int) -> int:
    # Tile big channel counts (keeps weight/output blocks bounded in VMEM,
    # also on v7x's 64 MiB); small or ragged channel counts use the full
    # extent, which is always a legal block dim.
    if c_out % 128 == 0:
        for cand in (512, 256, 128):
            if c_out % cand == 0:
                return cand
    return c_out


def sum_conv2d_same(x_nhwc: jax.Array, w_hwio: jax.Array, bias: jax.Array) -> jax.Array:
    """Fused 'same' conv: NHWC input -> (B, H*W, Cout) output (row-major spatial)."""
    B, H, W, c_in = x_nhwc.shape
    KH, KW, _, c_out = w_hwio.shape
    ph, pw = KH // 2, KW // 2
    hp, wp = H + KH - 1, W + KW - 1

    # Weight rows flattened kw-major / channel-minor to match the in-kernel
    # partial im2col layout.
    w_rows = w_hwio.reshape(KH, KW * c_in, c_out)
    b2 = bias.reshape(1, c_out)

    t_co = _pick_cout_tile(c_out)
    grid = (B, c_out // t_co)

    kernel = partial(_sum_conv_kernel, H=H, W=W, KH=KH, KW=KW, PH=ph, PW=pw)

    return pl.pallas_call(
        kernel,
        out_shape=jax.ShapeDtypeStruct((B, H * W, c_out), x_nhwc.dtype),
        grid_spec=pltpu.PrefetchScalarGridSpec(
            num_scalar_prefetch=0,
            grid=grid,
            in_specs=[
                pl.BlockSpec((1, H, W, c_in), lambda b, j: (b, 0, 0, 0)),
                pl.BlockSpec((KH, KW * c_in, t_co), lambda b, j: (0, 0, j)),
                pl.BlockSpec((1, t_co), lambda b, j: (0, j)),
            ],
            out_specs=pl.BlockSpec((1, H * W, t_co), lambda b, j: (b, 0, j)),
            scratch_shapes=[pltpu.VMEM((hp, wp, c_in), x_nhwc.dtype)],
        ),
        compiler_params=pltpu.CompilerParams(
            # Batch axis can be split across TensorCores; the Cout-tile axis
            # must stay sequential per core so the pl.when(j == 0) scratch
            # fill is always seen before j > 0 steps.
            dimension_semantics=("parallel", "arbitrary"),
        ),
    )(x_nhwc, w_rows, b2)


class CovLayer:
    """JAX/Pallas mirror of the PyTorch CovLayer module."""

    def __init__(self, dim_in, dim_out, k, *, key, dtype=jnp.float32):
        self.dim_in = dim_in
        self.dim_out = dim_out
        self.k = k
        self.weights = []   # weights[i][branch]: (kh, kw, dim_in, dim_out)  (HWIO)
        self.biases = []    # biases[i][branch]:  (dim_out,)
        keys = iter(jax.random.split(key, 2 * k * len(_KERNEL_SIZES)))
        for _ in range(k):
            ws, bs = [], []
            for (kh, kw) in _KERNEL_SIZES:
                fan_in = dim_in * kh * kw
                bound = 1.0 / math.sqrt(fan_in)
                ws.append(jax.random.uniform(next(keys), (kh, kw, dim_in, dim_out),
                                             dtype, minval=-bound, maxval=bound))
                bs.append(jax.random.uniform(next(keys), (dim_out,), dtype,
                                             minval=-bound, maxval=bound))
            self.weights.append(ws)
            self.biases.append(bs)
        # Fuse the six branches into one 7x7 kernel ONCE at construction:
        # embed each odd-sized kernel centered in the 7x7 window and sum;
        # biases just add.
        self.fused = [self._fuse_params(i) for i in range(k)]

    def _fuse_params(self, i):
        w_sum = jnp.zeros((_KH, _KW, self.dim_in, self.dim_out),
                          self.weights[i][0].dtype)
        for w in self.weights[i]:
            kh, kw = w.shape[0], w.shape[1]
            oh, ow = (_KH - kh) // 2, (_KW - kw) // 2
            w_sum = w_sum.at[oh:oh + kh, ow:ow + kw].add(w)
        b_sum = self.biases[i][0]
        for b in self.biases[i][1:]:
            b_sum = b_sum + b
        return w_sum, b_sum

    def __call__(self, tokens):
        out = list(tokens)
        for i in range(len(out)):
            t = out[i]
            if t.ndim == 3:
                b, n1, c = t.shape
                s = int(round(math.sqrt(n1 - 1)))
                x = t[:, 1:, :].reshape(b, s, s, c)      # NHWC, row-major like torch .view
                w, bias = self.fused[i]
                out[i] = sum_conv2d_same(x, w, bias)     # (B, s*s, dim_out)
            else:
                # TODO(synk): the PyTorch 4-D branch calls self.fc[i], which is never
                # defined in the original module (would raise AttributeError); tokens
                # of that rank are passed through unchanged.
                pass
        return out


if __name__ == "__main__":
    key = jax.random.PRNGKey(0)
    k_params, k_x0, k_x1 = jax.random.split(key, 3)

    dim_in, dim_out, k = 4, 8, 2
    B, S = 2, 8                                   # 8x8 spatial -> seq = 1 + 64

    layer = CovLayer(dim_in, dim_out, k, key=k_params)
    tokens = [
        jax.random.normal(k_x0, (B, 1 + S * S, dim_in), jnp.float32),
        jax.random.normal(k_x1, (B, 1 + S * S, dim_in), jnp.float32),
    ]

    outs = layer(tokens)
    outs = jax.block_until_ready(outs)

    # Plain-JAX reference: run all six branches with lax.conv and sum.
    for i in range(k):
        x = tokens[i][:, 1:, :].reshape(B, S, S, dim_in)
        ref = None
        for w, b in zip(layer.weights[i], layer.biases[i]):
            y = jax.lax.conv_general_dilated(
                x, w, window_strides=(1, 1), padding="SAME",
                dimension_numbers=("NHWC", "HWIO", "NHWC"),
                precision=jax.lax.Precision.HIGHEST) + b
            ref = y if ref is None else ref + y
        ref = ref.reshape(B, S * S, dim_out)
        assert outs[i].shape == (B, S * S, dim_out)
        assert outs[i].dtype == tokens[i].dtype
        assert jnp.allclose(outs[i], ref, atol=1e-4, rtol=1e-4), f"token {i} mismatch"

    print("KERNEL_OK")
</pallas_src>

<mosaic_0001>
module attributes {stable_mosaic.version = 11 : i64} {
  func.func @_sum_conv_kernel(%arg0: i32, %arg1: i32, %arg2: memref<1x8x8x4xf32, #tpu.memory_space<vmem>>, %arg3: memref<7x28x8xf32, #tpu.memory_space<vmem>>, %arg4: memref<1x8xf32, #tpu.memory_space<vmem>>, %arg5: memref<1x64x8xf32, #tpu.memory_space<vmem>>, %arg6: memref<14x14x4xf32, #tpu.memory_space<vmem>>) attributes {dimension_semantics = [#tpu.dimension_semantics<parallel>, #tpu.dimension_semantics<arbitrary>], iteration_bounds = array<i64: 2, 1>, scalar_prefetch = 0 : i64, scratch_operands = 1 : i64, tpu.core_type = #tpu.core_type<tc>, window_params = [{transform_indices = @transform_0, window_bounds = array<i64: 1, 8, 8, 4>}, {transform_indices = @transform_1, window_bounds = array<i64: 7, 28, 8>}, {transform_indices = @transform_2, window_bounds = array<i64: 1, 8>}, {transform_indices = @transform_3, window_bounds = array<i64: 1, 64, 8>}]} {
    %c0_i32 = arith.constant 0 : i32
    %0 = arith.cmpi eq, %arg1, %c0_i32 : i32
    %1 = arith.extui %0 : i1 to i32
    %c0_i32_0 = arith.constant 0 : i32
    %2 = arith.cmpi ne, %1, %c0_i32_0 : i32
    scf.if %2 {
      %cst_48 = arith.constant 0.000000e+00 : f32
      %60 = vector.broadcast %cst_48 : f32 to vector<14x14x4xf32>
      %c0_49 = arith.constant 0 : index
      %c0_50 = arith.constant 0 : index
      %c0_51 = arith.constant 0 : index
      %61 = vector.load %arg6[%c0_49, %c0_50, %c0_51] : memref<14x14x4xf32, #tpu.memory_space<vmem>>, vector<14x14x4xf32>
      tpu.vector_store %arg6[%c0_49, %c0_50, %c0_51], %60 {strides = array<i32>} : memref<14x14x4xf32, #tpu.memory_space<vmem>>, vector<14x14x4xf32>,
      %c0_52 = arith.constant 0 : index
      %c0_53 = arith.constant 0 : index
      %c0_54 = arith.constant 0 : index
      %c0_55 = arith.constant 0 : index
      %62 = vector.load %arg2[%c0_52, %c0_53, %c0_54, %c0_55] : memref<1x8x8x4xf32, #tpu.memory_space<vmem>>, vector<1x8x8x4xf32>
      %63 = vector.shape_cast %62 : vector<1x8x8x4xf32> to vector<8x8x4xf32>
      %c3_56 = arith.constant 3 : index
      %c3_57 = arith.constant 3 : index
      %c0_58 = arith.constant 0 : index
      %64 = vector.load %arg6[%c3_56, %c3_57, %c0_58] : memref<14x14x4xf32, #tpu.memory_space<vmem>>, vector<8x8x4xf32>
      tpu.vector_store %arg6[%c3_56, %c3_57, %c0_58], %63 {strides = array<i32>} : memref<14x14x4xf32, #tpu.memory_space<vmem>>, vector<8x8x4xf32>,
    } else {
    }
    %c0 = arith.constant 0 : index
    %c0_1 = arith.constant 0 : index
    %c0_2 = arith.constant 0 : index
    %3 = vector.load %arg6[%c0, %c0_1, %c0_2] : memref<14x14x4xf32, #tpu.memory_space<vmem>>, vector<14x8x4xf32>
    %4 = vector.shape_cast %3 : vector<14x8x4xf32> to vector<112x4xf32>
    %c0_3 = arith.constant 0 : index
    %c1 = arith.constant 1 : index
    %c0_4 = arith.constant 0 : index
    %5 = vector.load %arg6[%c0_3, %c1, %c0_4] : memref<14x14x4xf32, #tpu.memory_space<vmem>>, vector<14x8x4xf32>
    %6 = vector.shape_cast %5 : vector<14x8x4xf32> to vector<112x4xf32>
    %c0_5 = arith.constant 0 : index
    %c2 = arith.constant 2 : index
    %c0_6 = arith.constant 0 : index
    %7 = vector.load %arg6[%c0_5, %c2, %c0_6] : memref<14x14x4xf32, #tpu.memory_space<vmem>>, vector<14x8x4xf32>
    %8 = vector.shape_cast %7 : vector<14x8x4xf32> to vector<112x4xf32>
    %c0_7 = arith.constant 0 : index
    %c3 = arith.constant 3 : index
    %c0_8 = arith.constant 0 : index
    %9 = vector.load %arg6[%c0_7, %c3, %c0_8] : memref<14x14x4xf32, #tpu.memory_space<vmem>>, vector<14x8x4xf32>
    %10 = vector.shape_cast %9 : vector<14x8x4xf32> to vector<112x4xf32>
    %c0_9 = arith.constant 0 : index
    %c4 = arith.constant 4 : index
    %c0_10 = arith.constant 0 : index
    %11 = vector.load %arg6[%c0_9, %c4, %c0_10] : memref<14x14x4xf32, #tpu.memory_space<vmem>>, vector<14x8x4xf32>
    %12 = vector.shape_cast %11 : vector<14x8x4xf32> to vector<112x4xf32>
    %c0_11 = arith.constant 0 : index
    %c5 = arith.constant 5 : index
    %c0_12 = arith.constant 0 : index
    %13 = vector.load %arg6[%c0_11, %c5, %c0_12] : memref<14x14x4xf32, #tpu.memory_space<vmem>>, vector<14x8x4xf32>
    %14 = vector.shape_cast %13 : vector<14x8x4xf32> to vector<112x4xf32>
    %c0_13 = arith.constant 0 : index
    %c6 = arith.constant 6 : index
    %c0_14 = arith.constant 0 : index
    %15 = vector.load %arg6[%c0_13, %c6, %c0_14] : memref<14x14x4xf32, #tpu.memory_space<vmem>>, vector<14x8x4xf32>
    %16 = vector.shape_cast %15 : vector<14x8x4xf32> to vector<112x4xf32>
    %17 = tpu.concatenate %4, %6, %8, %10, %12, %14, %16 in 1 : vector<112x4xf32>, vector<112x4xf32>, vector<112x4xf32>, vector<112x4xf32>, vector<112x4xf32>, vector<112x4xf32>, vector<112x4xf32> -> vector<112x28xf32>
    %cst = arith.constant 0.000000e+00 : f32
    %18 = vector.broadcast %cst : f32 to vector<64x8xf32>
    %19 = vector.extract_strided_slice %17 {offsets = [0, 0], sizes = [64, 28], strides = [1, 1]} : vector<112x28xf32> to vector<64x28xf32>
    %c0_15 = arith.constant 0 : index
    %c0_16 = arith.constant 0 : index
    %c0_17 = arith.constant 0 : index
    %20 = vector.load %arg3[%c0_15, %c0_16, %c0_17] : memref<7x28x8xf32, #tpu.memory_space<vmem>>, vector<1x28x8xf32>
    %21 = vector.shape_cast %20 : vector<1x28x8xf32> to vector<28x8xf32>
    %cst_18 = arith.constant dense<0.000000e+00> : vector<64x8xf32>
    %22 = tpu.matmul %19, %21, %cst_18 {dimension_numbers = #tpu.dot_dimension_numbers<[1], [0], [0], [1], [0, 0, 1, 1], [], []>} : vector<64x28xf32>, vector<28x8xf32>, vector<64x8xf32> -> vector<64x8xf32>
    %23 = arith.addf %18, %22 : vector<64x8xf32>
    %24 = vector.extract_strided_slice %17 {offsets = [8, 0], sizes = [64, 28], strides = [1, 1]} : vector<112x28xf32> to vector<64x28xf32>
    %c1_19 = arith.constant 1 : index
    %c0_20 = arith.constant 0 : index
    %c0_21 = arith.constant 0 : index
    %25 = vector.load %arg3[%c1_19, %c0_20, %c0_21] : memref<7x28x8xf32, #tpu.memory_space<vmem>>, vector<1x28x8xf32>
    %26 = vector.shape_cast %25 : vector<1x28x8xf32> to vector<28x8xf32>
    %cst_22 = arith.constant dense<0.000000e+00> : vector<64x8xf32>
    %27 = tpu.matmul %24, %26, %cst_22 {dimension_numbers = #tpu.dot_dimension_numbers<[1], [0], [0], [1], [0, 0, 1, 1], [], []>} : vector<64x28xf32>, vector<28x8xf32>, vector<64x8xf32> -> vector<64x8xf32>
    %28 = arith.addf %23, %27 : vector<64x8xf32>
    %29 = vector.extract_strided_slice %17 {offsets = [16, 0], sizes = [64, 28], strides = [1, 1]} : vector<112x28xf32> to vector<64x28xf32>
    %c2_23 = arith.constant 2 : index
    %c0_24 = arith.constant 0 : index
    %c0_25 = arith.constant 0 : index
    %30 = vector.load %arg3[%c2_23, %c0_24, %c0_25] : memref<7x28x8xf32, #tpu.memory_space<vmem>>, vector<1x28x8xf32>
    %31 = vector.shape_cast %30 : vector<1x28x8xf32> to vector<28x8xf32>
    %cst_26 = arith.constant dense<0.000000e+00> : vector<64x8xf32>
    %32 = tpu.matmul %29, %31, %cst_26 {dimension_numbers = #tpu.dot_dimension_numbers<[1], [0], [0], [1], [0, 0, 1, 1], [], []>} : vector<64x28xf32>, vector<28x8xf32>, vector<64x8xf32> -> vector<64x8xf32>
    %33 = arith.addf %28, %32 : vector<64x8xf32>
    %34 = vector.extract_strided_slice %17 {offsets = [24, 0], sizes = [64, 28], strides = [1, 1]} : vector<112x28xf32> to vector<64x28xf32>
    %c3_27 = arith.constant 3 : index
    %c0_28 = arith.constant 0 : index
    %c0_29 = arith.constant 0 : index
    %35 = vector.load %arg3[%c3_27, %c0_28, %c0_29] : memref<7x28x8xf32, #tpu.memory_space<vmem>>, vector<1x28x8xf32>
    %36 = vector.shape_cast %35 : vector<1x28x8xf32> to vector<28x8xf32>
    %cst_30 = arith.constant dense<0.000000e+00> : vector<64x8xf32>
    %37 = tpu.matmul %34, %36, %cst_30 {dimension_numbers = #tpu.dot_dimension_numbers<[1], [0], [0], [1], [0, 0, 1, 1], [], []>} : vector<64x28xf32>, vector<28x8xf32>, vector<64x8xf32> -> vector<64x8xf32>
    %38 = arith.addf %33, %37 : vector<64x8xf32>
    %39 = vector.extract_strided_slice %17 {offsets = [32, 0], sizes = [64, 28], strides = [1, 1]} : vector<112x28xf32> to vector<64x28xf32>
    %c4_31 = arith.constant 4 : index
    %c0_32 = arith.constant 0 : index
    %c0_33 = arith.constant 0 : index
    %40 = vector.load %arg3[%c4_31, %c0_32, %c0_33] : memref<7x28x8xf32, #tpu.memory_space<vmem>>, vector<1x28x8xf32>
    %41 = vector.shape_cast %40 : vector<1x28x8xf32> to vector<28x8xf32>
    %cst_34 = arith.constant dense<0.000000e+00> : vector<64x8xf32>
    %42 = tpu.matmul %39, %41, %cst_34 {dimension_numbers = #tpu.dot_dimension_numbers<[1], [0], [0], [1], [0, 0, 1, 1], [], []>} : vector<64x28xf32>, vector<28x8xf32>, vector<64x8xf32> -> vector<64x8xf32>
    %43 = arith.addf %38, %42 : vector<64x8xf32>
    %44 = vector.extract_strided_slice %17 {offsets = [40, 0], sizes = [64, 28], strides = [1, 1]} : vector<112x28xf32> to vector<64x28xf32>
    %c5_35 = arith.constant 5 : index
    %c0_36 = arith.constant 0 : index
    %c0_37 = arith.constant 0 : index
    %45 = vector.load %arg3[%c5_35, %c0_36, %c0_37] : memref<7x28x8xf32, #tpu.memory_space<vmem>>, vector<1x28x8xf32>
    %46 = vector.shape_cast %45 : vector<1x28x8xf32> to vector<28x8xf32>
    %cst_38 = arith.constant dense<0.000000e+00> : vector<64x8xf32>
    %47 = tpu.matmul %44, %46, %cst_38 {dimension_numbers = #tpu.dot_dimension_numbers<[1], [0], [0], [1], [0, 0, 1, 1], [], []>} : vector<64x28xf32>, vector<28x8xf32>, vector<64x8xf32> -> vector<64x8xf32>
    %48 = arith.addf %43, %47 : vector<64x8xf32>
    %49 = vector.extract_strided_slice %17 {offsets = [48, 0], sizes = [64, 28], strides = [1, 1]} : vector<112x28xf32> to vector<64x28xf32>
    %c6_39 = arith.constant 6 : index
    %c0_40 = arith.constant 0 : index
    %c0_41 = arith.constant 0 : index
    %50 = vector.load %arg3[%c6_39, %c0_40, %c0_41] : memref<7x28x8xf32, #tpu.memory_space<vmem>>, vector<1x28x8xf32>
    %51 = vector.shape_cast %50 : vector<1x28x8xf32> to vector<28x8xf32>
    %cst_42 = arith.constant dense<0.000000e+00> : vector<64x8xf32>
    %52 = tpu.matmul %49, %51, %cst_42 {dimension_numbers = #tpu.dot_dimension_numbers<[1], [0], [0], [1], [0, 0, 1, 1], [], []>} : vector<64x28xf32>, vector<28x8xf32>, vector<64x8xf32> -> vector<64x8xf32>
    %53 = arith.addf %48, %52 : vector<64x8xf32>
    %c0_43 = arith.constant 0 : index
    %c0_44 = arith.constant 0 : index
    %54 = vector.load %arg4[%c0_43, %c0_44] : memref<1x8xf32, #tpu.memory_space<vmem>>, vector<1x8xf32>
    %55 = vector.broadcast %54 : vector<1x8xf32> to vector<64x8xf32>
    %56 = arith.addf %53, %55 : vector<64x8xf32>
    %c0_45 = arith.constant 0 : index
    %c0_46 = arith.constant 0 : index
    %c0_47 = arith.constant 0 : index
    %57 = vector.load %arg5[%c0_45, %c0_46, %c0_47] : memref<1x64x8xf32, #tpu.memory_space<vmem>>, vector<1x64x8xf32>
    %58 = vector.shape_cast %57 : vector<1x64x8xf32> to vector<64x8xf32>
    %59 = vector.shape_cast %56 : vector<64x8xf32> to vector<1x64x8xf32>
    tpu.vector_store %arg5[%c0_45, %c0_46, %c0_47], %59 {strides = array<i32>} : memref<1x64x8xf32, #tpu.memory_space<vmem>>, vector<1x64x8xf32>,
    return
  }
  func.func @transform_0(%arg0: i32, %arg1: i32) -> (i32, i32, i32, i32) {
    %c0_i32 = arith.constant 0 : i32
    %c0_i32_0 = arith.constant 0 : i32
    %c0_i32_1 = arith.constant 0 : i32
    %c0_i32_2 = arith.constant 0 : i32
    return %arg0, %c0_i32, %c0_i32_0, %c0_i32_1 : i32, i32, i32, i32
  }
  func.func @transform_1(%arg0: i32, %arg1: i32) -> (i32, i32, i32) {
    %c0_i32 = arith.constant 0 : i32
    %c0_i32_0 = arith.constant 0 : i32
    %c0_i32_1 = arith.constant 0 : i32
    return %c0_i32, %c0_i32_0, %arg1 : i32, i32, i32
  }
  func.func @transform_2(%arg0: i32, %arg1: i32) -> (i32, i32) {
    %c0_i32 = arith.constant 0 : i32
    %c0_i32_0 = arith.constant 0 : i32
    return %c0_i32, %arg1 : i32, i32
  }
  func.func @transform_3(%arg0: i32, %arg1: i32) -> (i32, i32, i32) {
    %c0_i32 = arith.constant 0 : i32
    %c0_i32_0 = arith.constant 0 : i32
    return %arg0, %c0_i32, %arg1 : i32, i32, i32
  }
}

</mosaic_0001>

<llo_original>
// kernel: tpu_custom_call.1
$region0: #{tpu_custom_call.1}
  #allocation0 [shape = 'u32[]', space=smem, size = 0x4, offset = 0x4, fixed_abs, tag = 'smem constant byte address 0x4 - core index']
  #allocation1 [shape = 'u32[72,128]{1,0:T(1,128)}', space=vmem, size = 0x9000, scoped, tag = 'internal scratch']
  #allocation2 [shape = 'f32[14,14,4]{2,1,0:T(8,128)}', space=vmem, size = 0x1c000, scoped, tag = 'scratch operand']
  %s0 = inlined_call_operand.vmem [shape: f32[2,8,8,4], index: 0, kind: input, shape index: {}]
  %s1 = inlined_call_operand.vmem [shape: f32[7,28,8], index: 1, kind: input, shape index: {}]
  %s2 = inlined_call_operand.vmem [shape: f32[1,8], index: 2, kind: input, shape index: {}]
  %s3 = inlined_call_operand.vmem [shape: f32[2,64,8], index: 3, kind: output, shape index: {}]
  %s4 = sld [smem:[#allocation0]]
  $region49: #{tpu_custom_call.1} parent=0
    _
  %s6 = ssub.s32 1, %s4
  %s7 = scalar_select 0, %s6, %s4
  loop: start=0, step=1, limit=4
  $region2: #{tpu_custom_call.1} parent=0 // loop_pre_header
    _
  $region3: #{tpu_custom_call.1} parent=0 // loop_header
    %s9 = sphi 0, %s13
    %p10 = scmp.ge.s32.totalorder %s9, 4
    %s16 = sphi 0, %s28
    %s17 = sphi 0, %s24
    %s18 = sphi 0, %s16
    %s19 = sphi 0, %s17
    %s20 = sphi 0, %s18
    %s21 = sphi 0, %s19
    %s31 = sphi 0, %s33
    %s34 = sphi 0, %s31
    %s35 = sphi 0, %s34
    %s51 = sphi 0, %s35
    %s57 = sphi 0, %s59
    %s60 = sphi 0, %s57
    %s61 = sphi 0, %s60
    %s77 = sphi 0, %s61
    %s83 = sphi 0, %s85
    %s86 = sphi 0, %s83
    %s87 = sphi 0, %s86
    %s103 = sphi 0, %s87
    %s111 = sphi 0, %s113
    %s114 = sphi 0, %s111
    %s115 = sphi 0, %s114
    %s131 = sphi 0, %s115
  $region4: #{tpu_custom_call.1} parent=0 // loop_header_branch
    %12 = sbr.rel (%p10) target = $region8
  $region5: #{tpu_custom_call.1} parent=0 // loop_body
    %s14 = ssub.s32 %s9, 1
    %s15 = ssub.s32 %s9, 2
    %s22 = sadd.s32 1, %s17
    %p23 = scmp.ge.s32.totalorder %s22, 1
    %s24 = scalar_select %p23, 0, %s22
    %s25 = sadd.s32 1, %s16
    %s26 = scalar_select %p23, %s25, %s16
    %p27 = scmp.ge.s32.totalorder %s26, 2
    %s28 = scalar_select %p27, 0, %s26
    %s29 = ssub.s32 %s16, %s28
    %p30 = scmp.eq.s32.totalorder %s29, 0
    %s32 = sadd.s32 %s31, 1
    %s33 = scalar_select %p30, %s31, %s32
    %p36 = pneg %p30
    %p37 = scmp.eq.s32.totalorder %s9, 1
    %p38 = por %p36, %p37
    %p39 = scmp.ne.s32.totalorder %s31, %s34
    %p40 = scmp.eq.s32.totalorder %s9, 0
    %p41 = por %p39, %p40
    %p42 = scmp.ne.s32.totalorder %s31, %s34
    %p43 = scmp.eq.s32.totalorder %s14, 1
    %p44 = por %p42, %p43
    %p45 = scmp.ne.s32.totalorder %s34, %s35
    %p46 = scmp.eq.s32.totalorder %s14, 0
    %p47 = por %p45, %p46
    %p48 = scmp.ne.s32.totalorder %s34, %s35
    %p49 = scmp.eq.s32.totalorder %s15, 1
    %p50 = por %p48, %p49
    %p52 = scmp.ne.s32.totalorder %s35, %s51
    %p53 = scmp.eq.s32.totalorder %s15, 0
    %p54 = por %p52, %p53
    %s55 = ssub.s32 %s17, %s24
    %p56 = scmp.eq.s32.totalorder %s55, 0
    %s58 = sadd.s32 %s57, 1
    %s59 = scalar_select %p56, %s57, %s58
    %p62 = pneg %p56
    %p63 = scmp.eq.s32.totalorder %s9, 1
    %p64 = por %p62, %p63
    %p65 = scmp.ne.s32.totalorder %s57, %s60
    %p66 = scmp.eq.s32.totalorder %s9, 0
    %p67 = por %p65, %p66
    %p68 = scmp.ne.s32.totalorder %s57, %s60
    %p69 = scmp.eq.s32.totalorder %s14, 1
    %p70 = por %p68, %p69
    %p71 = scmp.ne.s32.totalorder %s60, %s61
    %p72 = scmp.eq.s32.totalorder %s14, 0
    %p73 = por %p71, %p72
    %p74 = scmp.ne.s32.totalorder %s60, %s61
    %p75 = scmp.eq.s32.totalorder %s15, 1
    %p76 = por %p74, %p75
    %p78 = scmp.ne.s32.totalorder %s61, %s77
    %p79 = scmp.eq.s32.totalorder %s15, 0
    %p80 = por %p78, %p79
    %s81 = ssub.s32 %s17, %s24
    %p82 = scmp.eq.s32.totalorder %s81, 0
    %s84 = sadd.s32 %s83, 1
    %s85 = scalar_select %p82, %s83, %s84
    %p88 = pneg %p82
    %p89 = scmp.eq.s32.totalorder %s9, 1
    %p90 = por %p88, %p89
    %p91 = scmp.ne.s32.totalorder %s83, %s86
    %p92 = scmp.eq.s32.totalorder %s9, 0
    %p93 = por %p91, %p92
    %p94 = scmp.ne.s32.totalorder %s83, %s86
    %p95 = scmp.eq.s32.totalorder %s14, 1
    %p96 = por %p94, %p95
    %p97 = scmp.ne.s32.totalorder %s86, %s87
    %p98 = scmp.eq.s32.totalorder %s14, 0
    %p99 = por %p97, %p98
    %p100 = scmp.ne.s32.totalorder %s86, %s87
    %p101 = scmp.eq.s32.totalorder %s15, 1
    %p102 = por %p100, %p101
    %p104 = scmp.ne.s32.totalorder %s87, %s103
    %p105 = scmp.eq.s32.totalorder %s15, 0
    %p106 = por %p104, %p105
    %s107 = ssub.s32 %s16, %s28
    %s108 = ssub.s32 %s17, %s24
    %s109 = sor.u32 %s107, %s108
    %p110 = scmp.eq.s32.totalorder %s109, 0
    %s112 = sadd.s32 %s111, 1
    %s113 = scalar_select %p110, %s111, %s112
    %p116 = pneg %p110
    %p117 = scmp.eq.s32.totalorder %s9, 1
    %p118 = por %p116, %p117
    %p119 = scmp.ne.s32.totalorder %s111, %s114
    %p120 = scmp.eq.s32.totalorder %s9, 0
    %p121 = por %p119, %p120
    %p122 = scmp.ne.s32.totalorder %s111, %s114
    %p123 = scmp.eq.s32.totalorder %s14, 1
    %p124 = por %p122, %p123
    %p125 = scmp.ne.s32.totalorder %s114, %s115
    %p126 = scmp.eq.s32.totalorder %s14, 0
    %p127 = por %p125, %p126
    %p128 = scmp.ne.s32.totalorder %s114, %s115
    %p129 = scmp.eq.s32.totalorder %s15, 1
    %p130 = por %p128, %p129
    %p132 = scmp.ne.s32.totalorder %s115, %s131
    %p133 = scmp.eq.s32.totalorder %s15, 0
    %p134 = por %p132, %p133
    %p135 = scmp.le.s32.totalorder 1, %s9
    %p136 = scmp.lt.s32.totalorder %s9, 3
    %p137 = pnand %p135, %p136
    %p138 = pneg %p137
    // Predicated region
    $region9: #{tpu_custom_call.1} parent=5 // pred_check
      _
    $region10: #{tpu_custom_call.1} parent=5 // pred_check_branch
      %140 = sbr.rel (%p137) target = $region12
    $region11: #{tpu_custom_call.1} parent=5 // pred_region
      %s141 = ssub.s32 %s9, 1
      // Predicated region
      $region13: #{tpu_custom_call.1} parent=11 // pred_check
        %p142 = pneg %p73
      $region14: #{tpu_custom_call.1} parent=11 // pred_check_branch
        %144 = sbr.rel (%p142) target = $region16
      $region15: #{tpu_custom_call.1} parent=11 // pred_region
        %p145 = scmp.lt.s32.totalorder %s19, 0
        %s146 = scalar_select %p145, %s19, 0
        %s147 = smul.addr %s146, 8
        %s148 = scalar_lea.vmem %s1, %s147
      $region16: #{tpu_custom_call.1} parent=11 // pred_fallthru
        _
      // Predicated region
      $region17: #{tpu_custom_call.1} parent=11 // pred_check
        %p149 = pneg %p99
      $region18: #{tpu_custom_call.1} parent=11 // pred_check_branch
        %151 = sbr.rel (%p149) target = $region20
      $region19: #{tpu_custom_call.1} parent=11 // pred_region
        %p152 = scmp.lt.s32.totalorder %s19, 0
        %s153 = scalar_select %p152, %s19, 0
        %s154 = scalar_lea.vmem %s2, %s153
      $region20: #{tpu_custom_call.1} parent=11 // pred_fallthru
        _
    $region12: #{tpu_custom_call.1} parent=5 // pred_fallthru
      _
    %p155 = scmp.lt.s32.totalorder %s9, 2
    // Predicated region
    $region21: #{tpu_custom_call.1} parent=5 // pred_check
      %p156 = pneg %p155
    $region22: #{tpu_custom_call.1} parent=5 // pred_check_branch
      %158 = sbr.rel (%p156) target = $region24
    $region23: #{tpu_custom_call.1} parent=5 // pred_region
      // Predicated region
      $region25: #{tpu_custom_call.1} parent=23 // pred_check
        %p159 = pneg %p41
      $region26: #{tpu_custom_call.1} parent=23 // pred_check_branch
        %161 = sbr.rel (%p159) target = $region28
      $region27: #{tpu_custom_call.1} parent=23 // pred_region
        %p162 = scmp.lt.s32.totalorder %s16, 1
        %s163 = scalar_select %p162, %s16, 1
        %s164 = smul.addr %s163, 8
        %s165 = smul.addr %s164, 8
        %s166 = scalar_lea.vmem %s0, %s165
      $region28: #{tpu_custom_call.1} parent=23 // pred_fallthru
        _
    $region24: #{tpu_custom_call.1} parent=5 // pred_fallthru
      _
    %p167 = scmp.le.s32.totalorder 1, %s9
    %p168 = scmp.lt.s32.totalorder %s9, 3
    %p169 = pnand %p167, %p168
    %p170 = pneg %p169
    // Predicated region
    $region29: #{tpu_custom_call.1} parent=5 // pred_check
      _
    $region30: #{tpu_custom_call.1} parent=5 // pred_check_branch
      %172 = sbr.rel (%p169) target = $region32
    $region31: #{tpu_custom_call.1} parent=5 // pred_region
      %s173 = ssub.s32 %s9, 1
      %p174 = scmp.lt.s32.totalorder %s18, 1
      %s175 = scalar_select %p174, %s18, 1
      %s176 = smul.addr %s175, 8
      %s177 = smul.addr %s176, 8
      %s178 = scalar_lea.vmem %s0, %s177
      %p179 = pneg %p47
      %p180 = pneg %p44
      %p181 = scmp.lt.s32.totalorder %s19, 0
      %s182 = scalar_select %p181, %s19, 0
      %s183 = smul.addr %s182, 8
      %s184 = scalar_lea.vmem %s1, %s183
      %p185 = pneg %p73
      %p186 = pneg %p70
      %p187 = scmp.lt.s32.totalorder %s19, 0
      %s188 = scalar_select %p187, %s19, 0
      %s189 = scalar_lea.vmem %s2, %s188
      %p190 = pneg %p99
      %p191 = pneg %p96
      %p192 = pneg %p127
      %p193 = pneg %p124
      %p194 = scmp.lt.s32.totalorder %s18, 1
      %s195 = scalar_select %p194, %s18, 1
      %p196 = scmp.lt.s32.totalorder %s19, 0
      %s197 = scalar_select %p196, %s19, 0
      %s198 = smul.addr %s195, 8
      %s199 = sadd.s32 %s197, %s198
      %s200 = smul.addr %s199, 8
      %s201 = scalar_lea.vmem %s3, %s200
      %p202 = scmp.lt.s32.totalorder %s18, 1
      %s203 = scalar_select %p202, %s18, 1
      %s204 = smul.addr %s203, 8
      %s205 = smul.addr %s204, 8
      %s206 = scalar_lea.vmem %s0, %s205
      %p207 = scmp.lt.s32.totalorder %s19, 0
      %s208 = scalar_select %p207, %s19, 0
      %s209 = smul.addr %s208, 8
      %s210 = scalar_lea.vmem %s1, %s209
      %p211 = scmp.lt.s32.totalorder %s19, 0
      %s212 = scalar_select %p211, %s19, 0
      %s213 = scalar_lea.vmem %s2, %s212
      %p214 = scmp.lt.s32.totalorder %s18, 1
      %s215 = scalar_select %p214, %s18, 1
      %p216 = scmp.lt.s32.totalorder %s19, 0
      %s217 = scalar_select %p216, %s19, 0
      %s218 = smul.addr %s215, 8
      %s219 = sadd.s32 %s217, %s218
      %s220 = smul.addr %s219, 8
      %s221 = scalar_lea.vmem %s3, %s220
      %p222 = scmp.eq.s32.totalorder %s19, 0
      // Predicated region
      $region33: #{tpu_custom_call.1} parent=31 // pred_check
        %p223 = pneg %p222
      $region34: #{tpu_custom_call.1} parent=31 // pred_check_branch
        %225 = sbr.rel (%p223) target = $region36
      $region35: #{tpu_custom_call.1} parent=31 // pred_region
        %vm226 = vcmask 31744
        %227 = vst.msk [vmem:[#allocation2] sm:$0xff] %vm226, 0.0
        %vm228 = vcmask 29696
        %229 = vst.msk [vmem:[#allocation2 + $0x8] sm:$0x3f] %vm228, 0.0
        %230 = vst.msk [vmem:[#allocation2 + $0x10] sm:$0xff] %vm226, 0.0
        %231 = vst.msk [vmem:[#allocation2 + $0x18] sm:$0x3f] %vm228, 0.0
        %232 = vst.msk [vmem:[#allocation2 + $0x20] sm:$0xff] %vm226, 0.0
        %233 = vst.msk [vmem:[#allocation2 + $0x28] sm:$0x3f] %vm228, 0.0
        %234 = vst.msk [vmem:[#allocation2 + $0x30] sm:$0xff] %vm226, 0.0
        %235 = vst.msk [vmem:[#allocation2 + $0x38] sm:$0x3f] %vm228, 0.0
        %236 = vst.msk [vmem:[#allocation2 + $0x40] sm:$0xff] %vm226, 0.0
        %237 = vst.msk [vmem:[#allocation2 + $0x48] sm:$0x3f] %vm228, 0.0
        %238 = vst.msk [vmem:[#allocation2 + $0x50] sm:$0xff] %vm226, 0.0
        %239 = vst.msk [vmem:[#allocation2 + $0x58] sm:$0x3f] %vm228, 0.0
        %240 = vst.msk [vmem:[#allocation2 + $0x60] sm:$0xff] %vm226, 0.0
        %241 = vst.msk [vmem:[#allocation2 + $0x68] sm:$0x3f] %vm228, 0.0
        %242 = vst.msk [vmem:[#allocation2 + $0x70] sm:$0xff] %vm226, 0.0
        %243 = vst.msk [vmem:[#allocation2 + $0x78] sm:$0x3f] %vm228, 0.0
        %244 = vst.msk [vmem:[#allocation2 + $0x80] sm:$0xff] %vm226, 0.0
        %245 = vst.msk [vmem:[#allocation2 + $0x88] sm:$0x3f] %vm228, 0.0
        %246 = vst.msk [vmem:[#allocation2 + $0x90] sm:$0xff] %vm226, 0.0
        %247 = vst.msk [vmem:[#allocation2 + $0x98] sm:$0x3f] %vm228, 0.0
        %248 = vst.msk [vmem:[#allocation2 + $0xa0] sm:$0xff] %vm226, 0.0
        %249 = vst.msk [vmem:[#allocation2 + $0xa8] sm:$0x3f] %vm228, 0.0
        %250 = vst.msk [vmem:[#allocation2 + $0xb0] sm:$0xff] %vm226, 0.0
        %251 = vst.msk [vmem:[#allocation2 + $0xb8] sm:$0x3f] %vm228, 0.0
        %252 = vst.msk [vmem:[#allocation2 + $0xc0] sm:$0xff] %vm226, 0.0
        %253 = vst.msk [vmem:[#allocation2 + $0xc8] sm:$0x3f] %vm228, 0.0
        %254 = vst.msk [vmem:[#allocation2 + $0xd0] sm:$0xff] %vm226, 0.0
        %255 = vst.msk [vmem:[#allocation2 + $0xd8] sm:$0x3f] %vm228, 0.0
        %v256 = vld [vmem:[%s206] sm:$0xff]
        %v257 = vld [vmem:[%s206 + $0x8] sm:$0xff]
        %v258 = vld [vmem:[%s206 + $0x10] sm:$0xff]
        %v259 = vld [vmem:[%s206 + $0x18] sm:$0xff]
        %v260 = vld [vmem:[%s206 + $0x20] sm:$0xff]
        %v261 = vld [vmem:[%s206 + $0x28] sm:$0xff]
        %v262 = vld [vmem:[%s206 + $0x30] sm:$0xff]
        %v263 = vld [vmem:[%s206 + $0x38] sm:$0xff]
        %s264 = scalar_lea.vmem [#allocation2], 48
        %265 = vst.msk [vmem:[%s264 + $0x3] sm:$0xff] %vm226, %v256
        %266 = vst.msk [vmem:[%s264 + $0x13] sm:$0xff] %vm226, %v257
        %267 = vst.msk [vmem:[%s264 + $0x23] sm:$0xff] %vm226, %v258
        %268 = vst.msk [vmem:[%s264 + $0x33] sm:$0xff] %vm226, %v259
        %269 = vst.msk [vmem:[%s264 + $0x43] sm:$0xff] %vm226, %v260
        %270 = vst.msk [vmem:[%s264 + $0x53] sm:$0xff] %vm226, %v261
        %271 = vst.msk [vmem:[%s264 + $0x63] sm:$0xff] %vm226, %v262
        %272 = vst.msk [vmem:[%s264 + $0x73] sm:$0xff] %vm226, %v263
      $region36: #{tpu_custom_call.1} parent=31 // pred_fallthru
        _
      %v273 = vld [vmem:[#allocation2] sm:$0xff]
      %v274 = vld [vmem:[#allocation2 + $0x10] sm:$0xff]
      %v275 = vld [vmem:[#allocation2 + $0x20] sm:$0xff]
      %v276 = vld [vmem:[#allocation2 + $0x30] sm:$0xff]
      %v277 = vld [vmem:[#allocation2 + $0x40] sm:$0xff]
      %v278 = vld [vmem:[#allocation2 + $0x50] sm:$0xff]
      %v279 = vld [vmem:[#allocation2 + $0x60] sm:$0xff]
      %v280 = vld [vmem:[#allocation2 + $0x70] sm:$0xff]
      %v281 = vld [vmem:[#allocation2 + $0x80] sm:$0xff]
      %v282 = vld [vmem:[#allocation2 + $0x90] sm:$0xff]
      %v283 = vld [vmem:[#allocation2 + $0xa0] sm:$0xff]
      %v284 = vld [vmem:[#allocation2 + $0xb0] sm:$0xff]
      %v285 = vld [vmem:[#allocation2 + $0xc0] sm:$0xff]
      %v286 = vld [vmem:[#allocation2 + $0xd0] sm:$0xff]
      %v287 = vld [vmem:[#allocation2 + $0x1] sm:$0xff]
      %v288 = vld [vmem:[#allocation2 + $0x11] sm:$0xff]
      %v289 = vld [vmem:[#allocation2 + $0x21] sm:$0xff]
      %v290 = vld [vmem:[#allocation2 + $0x31] sm:$0xff]
      %v291 = vld [vmem:[#allocation2 + $0x41] sm:$0xff]
      %v292 = vld [vmem:[#allocation2 + $0x51] sm:$0xff]
      %v293 = vld [vmem:[#allocation2 + $0x61] sm:$0xff]
      %v294 = vld [vmem:[#allocation2 + $0x71] sm:$0xff]
      %v295 = vld [vmem:[#allocation2 + $0x81] sm:$0xff]
      %v296 = vld [vmem:[#allocation2 + $0x91] sm:$0xff]
      %v297 = vld [vmem:[#allocation2 + $0xa1] sm:$0xff]
      %v298 = vld [vmem:[#allocation2 + $0xb1] sm:$0xff]
      %v299 = vld [vmem:[#allocation2 + $0xc1] sm:$0xff]
      %v300 = vld [vmem:[#allocation2 + $0xd1] sm:$0xff]
      %v301 = vld [vmem:[#allocation2 + $0x2] sm:$0xff]
      %v302 = vld [vmem:[#allocation2 + $0x12] sm:$0xff]
      %v303 = vld [vmem:[#allocation2 + $0x22] sm:$0xff]
      %v304 = vld [vmem:[#allocation2 + $0x32] sm:$0xff]
      %v305 = vld [vmem:[#allocation2 + $0x42] sm:$0xff]
      %v306 = vld [vmem:[#allocation2 + $0x52] sm:$0xff]
      %v307 = vld [vmem:[#allocation2 + $0x62] sm:$0xff]
      %v308 = vld [vmem:[#allocation2 + $0x72] sm:$0xff]
      %v309 = vld [vmem:[#allocation2 + $0x82] sm:$0xff]
      %v310 = vld [vmem:[#allocation2 + $0x92] sm:$0xff]
      %v311 = vld [vmem:[#allocation2 + $0xa2] sm:$0xff]
      %v312 = vld [vmem:[#allocation2 + $0xb2] sm:$0xff]
      %v313 = vld [vmem:[#allocation2 + $0xc2] sm:$0xff]
      %v314 = vld [vmem:[#allocation2 + $0xd2] sm:$0xff]
      %v315 = vld [vmem:[#allocation2 + $0x3] sm:$0xff]
      %v316 = vld [vmem:[#allocation2 + $0x13] sm:$0xff]
      %v317 = vld [vmem:[#allocation2 + $0x23] sm:$0xff]
      %v318 = vld [vmem:[#allocation2 + $0x33] sm:$0xff]
      %v319 = vld [vmem:[#allocation2 + $0x43] sm:$0xff]
      %v320 = vld [vmem:[#allocation2 + $0x53] sm:$0xff]
      %v321 = vld [vmem:[#allocation2 + $0x63] sm:$0xff]
      %v322 = vld [vmem:[#allocation2 + $0x73] sm:$0xff]
      %v323 = vld [vmem:[#allocation2 + $0x83] sm:$0xff]
      %v324 = vld [vmem:[#allocation2 + $0x93] sm:$0xff]
      %v325 = vld [vmem:[#allocation2 + $0xa3] sm:$0xff]
      %v326 = vld [vmem:[#allocation2 + $0xb3] sm:$0xff]
      %v327 = vld [vmem:[#allocation2 + $0xc3] sm:$0xff]
      %v328 = vld [vmem:[#allocation2 + $0xd3] sm:$0xff]
      %v329 = vld [vmem:[#allocation2 + $0x4] sm:$0xff]
      %v330 = vld [vmem:[#allocation2 + $0x14] sm:$0xff]
      %v331 = vld [vmem:[#allocation2 + $0x24] sm:$0xff]
      %v332 = vld [vmem:[#allocation2 + $0x34] sm:$0xff]
      %v333 = vld [vmem:[#allocation2 + $0x44] sm:$0xff]
      %v334 = vld [vmem:[#allocation2 + $0x54] sm:$0xff]
      %v335 = vld [vmem:[#allocation2 + $0x64] sm:$0xff]
      %v336 = vld [vmem:[#allocation2 + $0x74] sm:$0xff]
      %v337 = vld [vmem:[#allocation2 + $0x84] sm:$0xff]
      %v338 = vld [vmem:[#allocation2 + $0x94] sm:$0xff]
      %v339 = vld [vmem:[#allocation2 + $0xa4] sm:$0xff]
      %v340 = vld [vmem:[#allocation2 + $0xb4] sm:$0xff]
      %v341 = vld [vmem:[#allocation2 + $0xc4] sm:$0xff]
      %v342 = vld [vmem:[#allocation2 + $0xd4] sm:$0xff]
      %v343 = vld [vmem:[#allocation2 + $0x5] sm:$0xff]
      %v344 = vld [vmem:[#allocation2 + $0x15] sm:$0xff]
      %v345 = vld [vmem:[#allocation2 + $0x25] sm:$0xff]
      %v346 = vld [vmem:[#allocation2 + $0x35] sm:$0xff]
      %v347 = vld [vmem:[#allocation2 + $0x45] sm:$0xff]
      %v348 = vld [vmem:[#allocation2 + $0x55] sm:$0xff]
      %v349 = vld [vmem:[#allocation2 + $0x65] sm:$0xff]
      %v350 = vld [vmem:[#allocation2 + $0x75] sm:$0xff]
      %v351 = vld [vmem:[#allocation2 + $0x85] sm:$0xff]
      %v352 = vld [vmem:[#allocation2 + $0x95] sm:$0xff]
      %v353 = vld [vmem:[#allocation2 + $0xa5] sm:$0xff]
      %v354 = vld [vmem:[#allocation2 + $0xb5] sm:$0xff]
      %v355 = vld [vmem:[#allocation2 + $0xc5] sm:$0xff]
      %v356 = vld [vmem:[#allocation2 + $0xd5] sm:$0xff]
      %v357 = vld [vmem:[#allocation2 + $0x6] sm:$0xff]
      %v358 = vld [vmem:[#allocation2 + $0x16] sm:$0xff]
      %v359 = vld [vmem:[#allocation2 + $0x26] sm:$0xff]
      %v360 = vld [vmem:[#allocation2 + $0x36] sm:$0xff]
      %v361 = vld [vmem:[#allocation2 + $0x46] sm:$0xff]
      %v362 = vld [vmem:[#allocation2 + $0x56] sm:$0xff]
      %v363 = vld [vmem:[#allocation2 + $0x66] sm:$0xff]
      %v364 = vld [vmem:[#allocation2 + $0x76] sm:$0xff]
      %v365 = vld [vmem:[#allocation2 + $0x86] sm:$0xff]
      %v366 = vld [vmem:[#allocation2 + $0x96] sm:$0xff]
      %v367 = vld [vmem:[#allocation2 + $0xa6] sm:$0xff]
      %v368 = vld [vmem:[#allocation2 + $0xb6] sm:$0xff]
      %v369 = vld [vmem:[#allocation2 + $0xc6] sm:$0xff]
      %v370 = vld [vmem:[#allocation2 + $0xd6] sm:$0xff]
      %385 = vrot.lane.b32.xlu0 %v287, 4
      %v386 = vpop.permute.xlu0 %385
      %387 = vrot.lane.b32.xlu0 %v288, 4
      %v388 = vpop.permute.xlu0 %387
      %389 = vrot.lane.b32.xlu0 %v289, 4
      %v390 = vpop.permute.xlu0 %389
      %391 = vrot.lane.b32.xlu0 %v290, 4
      %v392 = vpop.permute.xlu0 %391
      %393 = vrot.lane.b32.xlu0 %v291, 4
      %v394 = vpop.permute.xlu0 %393
      %395 = vrot.lane.b32.xlu0 %v292, 4
      %v396 = vpop.permute.xlu0 %395
      %397 = vrot.lane.b32.xlu0 %v293, 4
      %v398 = vpop.permute.xlu0 %397
      %399 = vrot.lane.b32.xlu0 %v294, 4
      %v400 = vpop.permute.xlu0 %399
      %401 = vrot.lane.b32.xlu0 %v295, 4
      %v402 = vpop.permute.xlu0 %401
      %403 = vrot.lane.b32.xlu0 %v296, 4
      %v404 = vpop.permute.xlu0 %403
      %405 = vrot.lane.b32.xlu0 %v297, 4
      %v406 = vpop.permute.xlu0 %405
      %407 = vrot.lane.b32.xlu0 %v298, 4
      %v408 = vpop.permute.xlu0 %407
      %409 = vrot.lane.b32.xlu0 %v299, 4
      %v410 = vpop.permute.xlu0 %409
      %411 = vrot.lane.b32.xlu0 %v300, 4
      %v412 = vpop.permute.xlu0 %411
      %441 = vrot.lane.b32.xlu0 %v301, 8
      %v442 = vpop.permute.xlu0 %441
      %443 = vrot.lane.b32.xlu0 %v302, 8
      %v444 = vpop.permute.xlu0 %443
      %445 = vrot.lane.b32.xlu0 %v303, 8
      %v446 = vpop.permute.xlu0 %445
      %447 = vrot.lane.b32.xlu0 %v304, 8
      %v448 = vpop.permute.xlu0 %447
      %449 = vrot.lane.b32.xlu0 %v305, 8
      %v450 = vpop.permute.xlu0 %449
      %451 = vrot.lane.b32.xlu0 %v306, 8
      %v452 = vpop.permute.xlu0 %451
      %453 = vrot.lane.b32.xlu0 %v307, 8
      %v454 = vpop.permute.xlu0 %453
      %455 = vrot.lane.b32.xlu0 %v308, 8
      %v456 = vpop.permute.xlu0 %455
      %457 = vrot.lane.b32.xlu0 %v309, 8
      %v458 = vpop.permute.xlu0 %457
      %459 = vrot.lane.b32.xlu0 %v310, 8
      %v460 = vpop.permute.xlu0 %459
      %461 = vrot.lane.b32.xlu0 %v311, 8
      %v462 = vpop.permute.xlu0 %461
      %463 = vrot.lane.b32.xlu0 %v312, 8
      %v464 = vpop.permute.xlu0 %463
      %465 = vrot.lane.b32.xlu0 %v313, 8
      %v466 = vpop.permute.xlu0 %465
      %467 = vrot.lane.b32.xlu0 %v314, 8
      %v468 = vpop.permute.xlu0 %467
      %497 = vrot.lane.b32.xlu0 %v315, 12
      %v498 = vpop.permute.xlu0 %497
      %499 = vrot.lane.b32.xlu0 %v316, 12
      %v500 = vpop.permute.xlu0 %499
      %501 = vrot.lane.b32.xlu0 %v317, 12
      %v502 = vpop.permute.xlu0 %501
      %503 = vrot.lane.b32.xlu0 %v318, 12
      %v504 = vpop.permute.xlu0 %503
      %505 = vrot.lane.b32.xlu0 %v319, 12
      %v506 = vpop.permute.xlu0 %505
      %507 = vrot.lane.b32.xlu0 %v320, 12
      %v508 = vpop.permute.xlu0 %507
      %509 = vrot.lane.b32.xlu0 %v321, 12
      %v510 = vpop.permute.xlu0 %509
      %511 = vrot.lane.b32.xlu0 %v322, 12
      %v512 = vpop.permute.xlu0 %511
      %513 = vrot.lane.b32.xlu0 %v323, 12
      %v514 = vpop.permute.xlu0 %513
      %515 = vrot.lane.b32.xlu0 %v324, 12
      %v516 = vpop.permute.xlu0 %515
      %517 = vrot.lane.b32.xlu0 %v325, 12
      %v518 = vpop.permute.xlu0 %517
      %519 = vrot.lane.b32.xlu0 %v326, 12
      %v520 = vpop.permute.xlu0 %519
      %521 = vrot.lane.b32.xlu0 %v327, 12
      %v522 = vpop.permute.xlu0 %521
      %523 = vrot.lane.b32.xlu0 %v328, 12
      %v524 = vpop.permute.xlu0 %523
      %553 = vrot.lane.b32.xlu0 %v329, 16
      %v554 = vpop.permute.xlu0 %553
      %555 = vrot.lane.b32.xlu0 %v330, 16
      %v556 = vpop.permute.xlu0 %555
      %557 = vrot.lane.b32.xlu0 %v331, 16
      %v558 = vpop.permute.xlu0 %557
      %559 = vrot.lane.b32.xlu0 %v332, 16
      %v560 = vpop.permute.xlu0 %559
      %561 = vrot.lane.b32.xlu0 %v333, 16
      %v562 = vpop.permute.xlu0 %561
      %563 = vrot.lane.b32.xlu0 %v334, 16
      %v564 = vpop.permute.xlu0 %563
      %565 = vrot.lane.b32.xlu0 %v335, 16
      %v566 = vpop.permute.xlu0 %565
      %567 = vrot.lane.b32.xlu0 %v336, 16
      %v568 = vpop.permute.xlu0 %567
      %569 = vrot.lane.b32.xlu0 %v337, 16
      %v570 = vpop.permute.xlu0 %569
      %571 = vrot.lane.b32.xlu0 %v338, 16
      %v572 = vpop.permute.xlu0 %571
      %573 = vrot.lane.b32.xlu0 %v339, 16
      %v574 = vpop.permute.xlu0 %573
      %575 = vrot.lane.b32.xlu0 %v340, 16
      %v576 = vpop.permute.xlu0 %575
      %577 = vrot.lane.b32.xlu0 %v341, 16
      %v578 = vpop.permute.xlu0 %577
      %579 = vrot.lane.b32.xlu0 %v342, 16
      %v580 = vpop.permute.xlu0 %579
      %609 = vrot.lane.b32.xlu0 %v343, 20
      %v610 = vpop.permute.xlu0 %609
      %611 = vrot.lane.b32.xlu0 %v344, 20
      %v612 = vpop.permute.xlu0 %611
      %613 = vrot.lane.b32.xlu0 %v345, 20
      %v614 = vpop.permute.xlu0 %613
      %615 = vrot.lane.b32.xlu0 %v346, 20
      %v616 = vpop.permute.xlu0 %615
      %617 = vrot.lane.b32.xlu0 %v347, 20
      %v618 = vpop.permute.xlu0 %617
      %619 = vrot.lane.b32.xlu0 %v348, 20
      %v620 = vpop.permute.xlu0 %619
      %621 = vrot.lane.b32.xlu0 %v349, 20
      %v622 = vpop.permute.xlu0 %621
      %623 = vrot.lane.b32.xlu0 %v350, 20
      %v624 = vpop.permute.xlu0 %623
      %625 = vrot.lane.b32.xlu0 %v351, 20
      %v626 = vpop.permute.xlu0 %625
      %627 = vrot.lane.b32.xlu0 %v352, 20
      %v628 = vpop.permute.xlu0 %627
      %629 = vrot.lane.b32.xlu0 %v353, 20
      %v630 = vpop.permute.xlu0 %629
      %631 = vrot.lane.b32.xlu0 %v354, 20
      %v632 = vpop.permute.xlu0 %631
      %633 = vrot.lane.b32.xlu0 %v355, 20
      %v634 = vpop.permute.xlu0 %633
      %635 = vrot.lane.b32.xlu0 %v356, 20
      %v636 = vpop.permute.xlu0 %635
      %665 = vrot.lane.b32.xlu0 %v357, 24
      %v666 = vpop.permute.xlu0 %665
      %667 = vrot.lane.b32.xlu0 %v358, 24
      %v668 = vpop.permute.xlu0 %667
      %669 = vrot.lane.b32.xlu0 %v359, 24
      %v670 = vpop.permute.xlu0 %669
      %671 = vrot.lane.b32.xlu0 %v360, 24
      %v672 = vpop.permute.xlu0 %671
      %673 = vrot.lane.b32.xlu0 %v361, 24
      %v674 = vpop.permute.xlu0 %673
      %675 = vrot.lane.b32.xlu0 %v362, 24
      %v676 = vpop.permute.xlu0 %675
      %677 = vrot.lane.b32.xlu0 %v363, 24
      %v678 = vpop.permute.xlu0 %677
      %679 = vrot.lane.b32.xlu0 %v364, 24
      %v680 = vpop.permute.xlu0 %679
      %681 = vrot.lane.b32.xlu0 %v365, 24
      %v682 = vpop.permute.xlu0 %681
      %683 = vrot.lane.b32.xlu0 %v366, 24
      %v684 = vpop.permute.xlu0 %683
      %685 = vrot.lane.b32.xlu0 %v367, 24
      %v686 = vpop.permute.xlu0 %685
      %687 = vrot.lane.b32.xlu0 %v368, 24
      %v688 = vpop.permute.xlu0 %687
      %689 = vrot.lane.b32.xlu0 %v369, 24
      %v690 = vpop.permute.xlu0 %689
      %691 = vrot.lane.b32.xlu0 %v370, 24
      %v692 = vpop.permute.xlu0 %691
      %vm707 = vcmask 31744
      %v708 = vsel %vm707, %v273, %v386
      %v709 = vsel %vm707, %v274, %v388
      %v710 = vsel %vm707, %v275, %v390
      %v711 = vsel %vm707, %v276, %v392
      %v712 = vsel %vm707, %v277, %v394
      %v713 = vsel %vm707, %v278, %v396
      %v714 = vsel %vm707, %v279, %v398
      %v715 = vsel %vm707, %v280, %v400
      %v716 = vsel %vm707, %v281, %v402
      %v717 = vsel %vm707, %v282, %v404
      %v718 = vsel %vm707, %v283, %v406
      %v719 = vsel %vm707, %v284, %v408
      %v720 = vsel %vm707, %v285, %v410
      %v721 = vsel %vm707, %v286, %v412
      %vm722 = vcmask 64512
      %v723 = vsel %vm722, %v708, %v442
      %v724 = vsel %vm722, %v709, %v444
      %v725 = vsel %vm722, %v710, %v446
      %v726 = vsel %vm722, %v711, %v448
      %v727 = vsel %vm722, %v712, %v450
      %v728 = vsel %vm722, %v713, %v452
      %v729 = vsel %vm722, %v714, %v454
      %v730 = vsel %vm722, %v715, %v456
      %v731 = vsel %vm722, %v716, %v458
      %v732 = vsel %vm722, %v717, %v460
      %v733 = vsel %vm722, %v718, %v462
      %v734 = vsel %vm722, %v719, %v464
      %v735 = vsel %vm722, %v720, %v466
      %v736 = vsel %vm722, %v721, %v468
      %vm737 = vcmask 97280
      %v738 = vsel %vm737, %v723, %v498
      %v739 = vsel %vm737, %v724, %v500
      %v740 = vsel %vm737, %v725, %v502
      %v741 = vsel %vm737, %v726, %v504
      %v742 = vsel %vm737, %v727, %v506
      %v743 = vsel %vm737, %v728, %v508
      %v744 = vsel %vm737, %v729, %v510
      %v745 = vsel %vm737, %v730, %v512
      %v746 = vsel %vm737, %v731, %v514
      %v747 = vsel %vm737, %v732, %v516
      %v748 = vsel %vm737, %v733, %v518
      %v749 = vsel %vm737, %v734, %v520
      %v750 = vsel %vm737, %v735, %v522
      %v751 = vsel %vm737, %v736, %v524
      %vm752 = vcmask 130048
      %v753 = vsel %vm752, %v738, %v554
      %v754 = vsel %vm752, %v739, %v556
      %v755 = vsel %vm752, %v740, %v558
      %v756 = vsel %vm752, %v741, %v560
      %v757 = vsel %vm752, %v742, %v562
      %v758 = vsel %vm752, %v743, %v564
      %v759 = vsel %vm752, %v744, %v566
      %v760 = vsel %vm752, %v745, %v568
      %v761 = vsel %vm752, %v746, %v570
      %v762 = vsel %vm752, %v747, %v572
      %v763 = vsel %vm752, %v748, %v574
      %v764 = vsel %vm752, %v749, %v576
      %v765 = vsel %vm752, %v750, %v578
      %v766 = vsel %vm752, %v751, %v580
      %vm767 = vcmask 162816
      %v768 = vsel %vm767, %v753, %v610
      %v769 = vsel %vm767, %v754, %v612
      %v770 = vsel %vm767, %v755, %v614
      %v771 = vsel %vm767, %v756, %v616
      %v772 = vsel %vm767, %v757, %v618
      %v773 = vsel %vm767, %v758, %v620
      %v774 = vsel %vm767, %v759, %v622
      %v775 = vsel %vm767, %v760, %v624
      %v776 = vsel %vm767, %v761, %v626
      %v777 = vsel %vm767, %v762, %v628
      %v778 = vsel %vm767, %v763, %v630
      %v779 = vsel %vm767, %v764, %v632
      %v780 = vsel %vm767, %v765, %v634
      %v781 = vsel %vm767, %v766, %v636
      %vm782 = vcmask 195584
      %v783 = vsel %vm782, %v768, %v666
      %v784 = vsel %vm782, %v769, %v668
      %v785 = vsel %vm782, %v770, %v670
      %v786 = vsel %vm782, %v771, %v672
      %v787 = vsel %vm782, %v772, %v674
      %v788 = vsel %vm782, %v773, %v676
      %v789 = vsel %vm782, %v774, %v678
      %v790 = vsel %vm782, %v775, %v680
      %v791 = vsel %vm782, %v776, %v682
      %v792 = vsel %vm782, %v777, %v684
      %v793 = vsel %vm782, %v778, %v686
      %v794 = vsel %vm782, %v779, %v688
      %v795 = vsel %vm782, %v780, %v690
      %v796 = vsel %vm782, %v781, %v692
      %v797 = vld [vmem:[%s210] sm:$0xff]
      %v798 = vld [vmem:[%s210 + $0x8] sm:$0xff]
      %v799 = vld [vmem:[%s210 + $0x10] sm:$0xff]
      %v800 = vld [vmem:[%s210 + $0x18] sm:$0xf]
      %s801 = scalar_lea.vmem %s210, 32
      %v802 = vld [vmem:[%s801] sm:$0xff]
      %v803 = vld [vmem:[%s801 + $0x8] sm:$0xff]
      %v804 = vld [vmem:[%s801 + $0x10] sm:$0xff]
      %v805 = vld [vmem:[%s801 + $0x18] sm:$0xf]
      %vm806 = vcmask 228352
      %v808 = vsel %vm806, %v784, 0
      %v811 = vsel %vm806, %v785, 0
      %v814 = vsel %vm806, %v786, 0
      %v817 = vsel %vm806, %v787, 0
      %v820 = vsel %vm806, %v788, 0
      %v823 = vsel %vm806, %v789, 0
      %v826 = vsel %vm806, %v790, 0
      %v829 = vsel %vm806, %v791, 0
      %vm831 = vcmask 1043456
      %v833 = vsel %vm831, %v805, 0
      %835 = vmatpush.msra.mxu0 0.0
      %836 = vmatpush.msra.mxu0 0.0
      %837 = vmatpush.msra.mxu0 0.0
      %838 = vmatpush.msra.mxu0 0.0
      %839 = vmatpush.msra.mxu0 0.0
      %840 = vmatpush.msra.mxu0 0.0
      %841 = vmatpush.msra.mxu0 0.0
      %842 = vmatpush.msra.mxu0 0.0
      %843 = vmatpush.msra.mxu0 0.0
      %844 = vmatpush.msra.mxu0 0.0
      %845 = vmatpush.msra.mxu0 0.0
      %846 = vmatpush.msra.mxu0 0.0
      %847 = vmatpush.msra.mxu0 %v833
      %848 = vmatpush.msra.mxu0 %v804
      %849 = vmatpush.msra.mxu0 %v803
      %850 = vmatpush.msra.mxu0 %v802
      %851 = vmatmul.f32.gmra.mxu0 %v808
      %v852 = vpop.f32.mrf.mxu0
      %v853 = vadd.f32 0.0, %v852
      %854 = vmatmul.f32.gmra.mxu0 %v811
      %v855 = vpop.f32.mrf.mxu0
      %v856 = vadd.f32 0.0, %v855
      %857 = vmatmul.f32.gmra.mxu0 %v814
      %v858 = vpop.f32.mrf.mxu0
      %v859 = vadd.f32 0.0, %v858
      %860 = vmatmul.f32.gmra.mxu0 %v817
      %v861 = vpop.f32.mrf.mxu0
      %v862 = vadd.f32 0.0, %v861
      %863 = vmatmul.f32.gmra.mxu0 %v820
      %v864 = vpop.f32.mrf.mxu0
      %v865 = vadd.f32 0.0, %v864
      %866 = vmatmul.f32.gmra.mxu0 %v823
      %v867 = vpop.f32.mrf.mxu0
      %v868 = vadd.f32 0.0, %v867
      %869 = vmatmul.f32.gmra.mxu0 %v826
      %v870 = vpop.f32.mrf.mxu0
      %v871 = vadd.f32 0.0, %v870
      %872 = vmatmul.f32.gmra.mxu0 %v829
      %v873 = vpop.f32.mrf.mxu0
      %v874 = vadd.f32 0.0, %v873
      %875 = vdwg.mxu0
      %v877 = vsel %vm806, %v783, 0
      %v880 = vsel %vm831, %v800, 0
      %882 = vmatpush.msra.mxu0 0.0
      %883 = vmatpush.msra.mxu0 0.0
      %884 = vmatpush.msra.mxu0 0.0
      %885 = vmatpush.msra.mxu0 0.0
      %886 = vmatpush.msra.mxu0 0.0
      %887 = vmatpush.msra.mxu0 0.0
      %888 = vmatpush.msra.mxu0 0.0
      %889 = vmatpush.msra.mxu0 0.0
      %890 = vmatpush.msra.mxu0 0.0
      %891 = vmatpush.msra.mxu0 0.0
      %892 = vmatpush.msra.mxu0 0.0
      %893 = vmatpush.msra.mxu0 0.0
      %894 = vmatpush.msra.mxu0 %v880
      %895 = vmatpush.msra.mxu0 %v799
      %896 = vmatpush.msra.mxu0 %v798
      %897 = vmatpush.msra.mxu0 %v797
      %898 = vmatmul.f32.gmra.mxu0 %v877
      %v899 = vpop.f32.mrf.mxu0
      %v900 = vadd.f32 %v853, %v899
      %901 = vmatmul.f32.gmra.mxu0 %v808
      %v902 = vpop.f32.mrf.mxu0
      %v903 = vadd.f32 %v856, %v902
      %904 = vmatmul.f32.gmra.mxu0 %v811
      %v905 = vpop.f32.mrf.mxu0
      %v906 = vadd.f32 %v859, %v905
      %907 = vmatmul.f32.gmra.mxu0 %v814
      %v908 = vpop.f32.mrf.mxu0
      %v909 = vadd.f32 %v862, %v908
      %910 = vmatmul.f32.gmra.mxu0 %v817
      %v911 = vpop.f32.mrf.mxu0
      %v912 = vadd.f32 %v865, %v911
      %913 = vmatmul.f32.gmra.mxu0 %v820
      %v914 = vpop.f32.mrf.mxu0
      %v915 = vadd.f32 %v868, %v914
      %916 = vmatmul.f32.gmra.mxu0 %v823
      %v917 = vpop.f32.mrf.mxu0
      %v918 = vadd.f32 %v871, %v917
      %919 = vmatmul.f32.gmra.mxu0 %v826
      %v920 = vpop.f32.mrf.mxu0
      %v921 = vadd.f32 %v874, %v920
      %922 = vdwg.mxu0
      %s923 = scalar_lea.vmem %s210, 64
      %v924 = vld [vmem:[%s923] sm:$0xff]
      %v925 = vld [vmem:[%s923 + $0x8] sm:$0xff]
      %v926 = vld [vmem:[%s923 + $0x10] sm:$0xff]
      %v927 = vld [vmem:[%s923 + $0x18] sm:$0xf]
      %v929 = vsel %vm806, %v792, 0
      %v932 = vsel %vm831, %v927, 0
      %934 = vmatpush.msra.mxu0 0.0
      %935 = vmatpush.msra.mxu0 0.0
      %936 = vmatpush.msra.mxu0 0.0
      %937 = vmatpush.msra.mxu0 0.0
      %938 = vmatpush.msra.mxu0 0.0
      %939 = vmatpush.msra.mxu0 0.0
      %940 = vmatpush.msra.mxu0 0.0
      %941 = vmatpush.msra.mxu0 0.0
      %942 = vmatpush.msra.mxu0 0.0
      %943 = vmatpush.msra.mxu0 0.0
      %944 = vmatpush.msra.mxu0 0.0
      %945 = vmatpush.msra.mxu0 0.0
      %946 = vmatpush.msra.mxu0 %v932
      %947 = vmatpush.msra.mxu0 %v926
      %948 = vmatpush.msra.mxu0 %v925
      %949 = vmatpush.msra.mxu0 %v924
      %950 = vmatmul.f32.gmra.mxu0 %v811
      %v951 = vpop.f32.mrf.mxu0
      %v952 = vadd.f32 0.0, %v951
      %953 = vmatmul.f32.gmra.mxu0 %v814
      %v954 = vpop.f32.mrf.mxu0
      %v955 = vadd.f32 0.0, %v954
      %956 = vmatmul.f32.gmra.mxu0 %v817
      %v957 = vpop.f32.mrf.mxu0
      %v958 = vadd.f32 0.0, %v957
      %959 = vmatmul.f32.gmra.mxu0 %v820
      %v960 = vpop.f32.mrf.mxu0
      %v961 = vadd.f32 0.0, %v960
      %962 = vmatmul.f32.gmra.mxu0 %v823
      %v963 = vpop.f32.mrf.mxu0
      %v964 = vadd.f32 0.0, %v963
      %965 = vmatmul.f32.gmra.mxu0 %v826
      %v966 = vpop.f32.mrf.mxu0
      %v967 = vadd.f32 0.0, %v966
      %968 = vmatmul.f32.gmra.mxu0 %v829
      %v969 = vpop.f32.mrf.mxu0
      %v970 = vadd.f32 0.0, %v969
      %971 = vmatmul.f32.gmra.mxu0 %v929
      %v972 = vpop.f32.mrf.mxu0
      %v973 = vadd.f32 0.0, %v972
      %974 = vdwg.mxu0
      %v975 = vadd.f32 %v900, %v952
      %v976 = vadd.f32 %v903, %v955
      %v977 = vadd.f32 %v906, %v958
      %v978 = vadd.f32 %v909, %v961
      %v979 = vadd.f32 %v912, %v964
      %v980 = vadd.f32 %v915, %v967
      %v981 = vadd.f32 %v918, %v970
      %v982 = vadd.f32 %v921, %v973
      %s983 = scalar_lea.vmem %s210, 96
      %v984 = vld [vmem:[%s983] sm:$0xff]
      %v985 = vld [vmem:[%s983 + $0x8] sm:$0xff]
      %v986 = vld [vmem:[%s983 + $0x10] sm:$0xff]
      %v987 = vld [vmem:[%s983 + $0x18] sm:$0xf]
      %v989 = vsel %vm806, %v793, 0
      %v992 = vsel %vm831, %v987, 0
      %994 = vmatpush.msra.mxu0 0.0
      %995 = vmatpush.msra.mxu0 0.0
      %996 = vmatpush.msra.mxu0 0.0
      %997 = vmatpush.msra.mxu0 0.0
      %998 = vmatpush.msra.mxu0 0.0
      %999 = vmatpush.msra.mxu0 0.0
      %1000 = vmatpush.msra.mxu0 0.0
      %1001 = vmatpush.msra.mxu0 0.0
      %1002 = vmatpush.msra.mxu0 0.0
      %1003 = vmatpush.msra.mxu0 0.0
      %1004 = vmatpush.msra.mxu0 0.0
      %1005 = vmatpush.msra.mxu0 0.0
      %1006 = vmatpush.msra.mxu0 %v992
      %1007 = vmatpush.msra.mxu0 %v986
      %1008 = vmatpush.msra.mxu0 %v985
      %1009 = vmatpush.msra.mxu0 %v984
      %1010 = vmatmul.f32.gmra.mxu0 %v814
      %v1011 = vpop.f32.mrf.mxu0
      %v1012 = vadd.f32 0.0, %v1011
      %1013 = vmatmul.f32.gmra.mxu0 %v817
      %v1014 = vpop.f32.mrf.mxu0
      %v1015 = vadd.f32 0.0, %v1014
      %1016 = vmatmul.f32.gmra.mxu0 %v820
      %v1017 = vpop.f32.mrf.mxu0
      %v1018 = vadd.f32 0.0, %v1017
      %1019 = vmatmul.f32.gmra.mxu0 %v823
      %v1020 = vpop.f32.mrf.mxu0
      %v1021 = vadd.f32 0.0, %v1020
      %1022 = vmatmul.f32.gmra.mxu0 %v826
      %v1023 = vpop.f32.mrf.mxu0
      %v1024 = vadd.f32 0.0, %v1023
      %1025 = vmatmul.f32.gmra.mxu0 %v829
      %v1026 = vpop.f32.mrf.mxu0
      %v1027 = vadd.f32 0.0, %v1026
      %1028 = vmatmul.f32.gmra.mxu0 %v929
      %v1029 = vpop.f32.mrf.mxu0
      %v1030 = vadd.f32 0.0, %v1029
      %1031 = vmatmul.f32.gmra.mxu0 %v989
      %v1032 = vpop.f32.mrf.mxu0
      %v1033 = vadd.f32 0.0, %v1032
      %1034 = vdwg.mxu0
      %v1035 = vadd.f32 %v975, %v1012
      %v1036 = vadd.f32 %v976, %v1015
      %v1037 = vadd.f32 %v977, %v1018
      %v1038 = vadd.f32 %v978, %v1021
      %v1039 = vadd.f32 %v979, %v1024
      %v1040 = vadd.f32 %v980, %v1027
      %v1041 = vadd.f32 %v981, %v1030
      %v1042 = vadd.f32 %v982, %v1033
      %s1043 = scalar_lea.vmem %s210, 128
      %v1044 = vld [vmem:[%s1043] sm:$0xff]
      %v1045 = vld [vmem:[%s1043 + $0x8] sm:$0xff]
      %v1046 = vld [vmem:[%s1043 + $0x10] sm:$0xff]
      %v1047 = vld [vmem:[%s1043 + $0x18] sm:$0xf]
      %v1049 = vsel %vm806, %v794, 0
      %v1052 = vsel %vm831, %v1047, 0
      %1054 = vmatpush.msra.mxu0 0.0
      %1055 = vmatpush.msra.mxu0 0.0
      %1056 = vmatpush.msra.mxu0 0.0
      %1057 = vmatpush.msra.mxu0 0.0
      %1058 = vmatpush.msra.mxu0 0.0
      %1059 = vmatpush.msra.mxu0 0.0
      %1060 = vmatpush.msra.mxu0 0.0
      %1061 = vmatpush.msra.mxu0 0.0
      %1062 = vmatpush.msra.mxu0 0.0
      %1063 = vmatpush.msra.mxu0 0.0
      %1064 = vmatpush.msra.mxu0 0.0
      %1065 = vmatpush.msra.mxu0 0.0
      %1066 = vmatpush.msra.mxu0 %v1052
      %1067 = vmatpush.msra.mxu0 %v1046
      %1068 = vmatpush.msra.mxu0 %v1045
      %1069 = vmatpush.msra.mxu0 %v1044
      %1070 = vmatmul.f32.gmra.mxu0 %v817
      %v1071 = vpop.f32.mrf.mxu0
      %v1072 = vadd.f32 0.0, %v1071
      %1073 = vmatmul.f32.gmra.mxu0 %v820
      %v1074 = vpop.f32.mrf.mxu0
      %v1075 = vadd.f32 0.0, %v1074
      %1076 = vmatmul.f32.gmra.mxu0 %v823
      %v1077 = vpop.f32.mrf.mxu0
      %v1078 = vadd.f32 0.0, %v1077
      %1079 = vmatmul.f32.gmra.mxu0 %v826
      %v1080 = vpop.f32.mrf.mxu0
      %v1081 = vadd.f32 0.0, %v1080
      %1082 = vmatmul.f32.gmra.mxu0 %v829
      %v1083 = vpop.f32.mrf.mxu0
      %v1084 = vadd.f32 0.0, %v1083
      %1085 = vmatmul.f32.gmra.mxu0 %v929
      %v1086 = vpop.f32.mrf.mxu0
      %v1087 = vadd.f32 0.0, %v1086
      %1088 = vmatmul.f32.gmra.mxu0 %v989
      %v1089 = vpop.f32.mrf.mxu0
      %v1090 = vadd.f32 0.0, %v1089
      %1091 = vmatmul.f32.gmra.mxu0 %v1049
      %v1092 = vpop.f32.mrf.mxu0
      %v1093 = vadd.f32 0.0, %v1092
      %1094 = vdwg.mxu0
      %v1095 = vadd.f32 %v1035, %v1072
      %v1096 = vadd.f32 %v1036, %v1075
      %v1097 = vadd.f32 %v1037, %v1078
      %v1098 = vadd.f32 %v1038, %v1081
      %v1099 = vadd.f32 %v1039, %v1084
      %v1100 = vadd.f32 %v1040, %v1087
      %v1101 = vadd.f32 %v1041, %v1090
      %v1102 = vadd.f32 %v1042, %v1093
      %s1103 = scalar_lea.vmem %s210, 160
      %v1104 = vld [vmem:[%s1103] sm:$0xff]
      %v1105 = vld [vmem:[%s1103 + $0x8] sm:$0xff]
      %v1106 = vld [vmem:[%s1103 + $0x10] sm:$0xff]
      %v1107 = vld [vmem:[%s1103 + $0x18] sm:$0xf]
      %v1109 = vsel %vm806, %v795, 0
      %v1112 = vsel %vm831, %v1107, 0
      %1114 = vmatpush.msra.mxu0 0.0
      %1115 = vmatpush.msra.mxu0 0.0
      %1116 = vmatpush.msra.mxu0 0.0
      %1117 = vmatpush.msra.mxu0 0.0
      %1118 = vmatpush.msra.mxu0 0.0
      %1119 = vmatpush.msra.mxu0 0.0
      %1120 = vmatpush.msra.mxu0 0.0
      %1121 = vmatpush.msra.mxu0 0.0
      %1122 = vmatpush.msra.mxu0 0.0
      %1123 = vmatpush.msra.mxu0 0.0
      %1124 = vmatpush.msra.mxu0 0.0
      %1125 = vmatpush.msra.mxu0 0.0
      %1126 = vmatpush.msra.mxu0 %v1112
      %1127 = vmatpush.msra.mxu0 %v1106
      %1128 = vmatpush.msra.mxu0 %v1105
      %1129 = vmatpush.msra.mxu0 %v1104
      %1130 = vmatmul.f32.gmra.mxu0 %v820
      %v1131 = vpop.f32.mrf.mxu0
      %v1132 = vadd.f32 0.0, %v1131
      %1133 = vmatmul.f32.gmra.mxu0 %v823
      %v1134 = vpop.f32.mrf.mxu0
      %v1135 = vadd.f32 0.0, %v1134
      %1136 = vmatmul.f32.gmra.mxu0 %v826
      %v1137 = vpop.f32.mrf.mxu0
      %v1138 = vadd.f32 0.0, %v1137
      %1139 = vmatmul.f32.gmra.mxu0 %v829
      %v1140 = vpop.f32.mrf.mxu0
      %v1141 = vadd.f32 0.0, %v1140
      %1142 = vmatmul.f32.gmra.mxu0 %v929
      %v1143 = vpop.f32.mrf.mxu0
      %v1144 = vadd.f32 0.0, %v1143
      %1145 = vmatmul.f32.gmra.mxu0 %v989
      %v1146 = vpop.f32.mrf.mxu0
      %v1147 = vadd.f32 0.0, %v1146
      %1148 = vmatmul.f32.gmra.mxu0 %v1049
      %v1149 = vpop.f32.mrf.mxu0
      %v1150 = vadd.f32 0.0, %v1149
      %1151 = vmatmul.f32.gmra.mxu0 %v1109
      %v1152 = vpop.f32.mrf.mxu0
      %v1153 = vadd.f32 0.0, %v1152
      %1154 = vdwg.mxu0
      %v1155 = vadd.f32 %v1095, %v1132
      %v1156 = vadd.f32 %v1096, %v1135
      %v1157 = vadd.f32 %v1097, %v1138
      %v1158 = vadd.f32 %v1098, %v1141
      %v1159 = vadd.f32 %v1099, %v1144
      %v1160 = vadd.f32 %v1100, %v1147
      %v1161 = vadd.f32 %v1101, %v1150
      %v1162 = vadd.f32 %v1102, %v1153
      %s1163 = scalar_lea.vmem %s210, 192
      %v1164 = vld [vmem:[%s1163] sm:$0xff]
      %v1165 = vld [vmem:[%s1163 + $0x8] sm:$0xff]
      %v1166 = vld [vmem:[%s1163 + $0x10] sm:$0xff]
      %v1167 = vld [vmem:[%s1163 + $0x18] sm:$0xf]
      %v1169 = vsel %vm806, %v796, 0
      %v1172 = vsel %vm831, %v1167, 0
      %1174 = vmatpush.msra.mxu0 0.0
      %1175 = vmatpush.msra.mxu0 0.0
      %1176 = vmatpush.msra.mxu0 0.0
      %1177 = vmatpush.msra.mxu0 0.0
      %1178 = vmatpush.msra.mxu0 0.0
      %1179 = vmatpush.msra.mxu0 0.0
      %1180 = vmatpush.msra.mxu0 0.0
      %1181 = vmatpush.msra.mxu0 0.0
      %1182 = vmatpush.msra.mxu0 0.0
      %1183 = vmatpush.msra.mxu0 0.0
      %1184 = vmatpush.msra.mxu0 0.0
      %1185 = vmatpush.msra.mxu0 0.0
      %1186 = vmatpush.msra.mxu0 %v1172
      %1187 = vmatpush.msra.mxu0 %v1166
      %1188 = vmatpush.msra.mxu0 %v1165
      %1189 = vmatpush.msra.mxu0 %v1164
      %1190 = vmatmul.f32.gmra.mxu0 %v823
      %v1191 = vpop.f32.mrf.mxu0
      %v1192 = vadd.f32 0.0, %v1191
      %1193 = vmatmul.f32.gmra.mxu0 %v826
      %v1194 = vpop.f32.mrf.mxu0
      %v1195 = vadd.f32 0.0, %v1194
      %1196 = vmatmul.f32.gmra.mxu0 %v829
      %v1197 = vpop.f32.mrf.mxu0
      %v1198 = vadd.f32 0.0, %v1197
      %1199 = vmatmul.f32.gmra.mxu0 %v929
      %v1200 = vpop.f32.mrf.mxu0
      %v1201 = vadd.f32 0.0, %v1200
      %1202 = vmatmul.f32.gmra.mxu0 %v989
      %v1203 = vpop.f32.mrf.mxu0
      %v1204 = vadd.f32 0.0, %v1203
      %1205 = vmatmul.f32.gmra.mxu0 %v1049
      %v1206 = vpop.f32.mrf.mxu0
      %v1207 = vadd.f32 0.0, %v1206
      %1208 = vmatmul.f32.gmra.mxu0 %v1109
      %v1209 = vpop.f32.mrf.mxu0
      %v1210 = vadd.f32 0.0, %v1209
      %1211 = vmatmul.f32.gmra.mxu0 %v1169
      %v1212 = vpop.f32.mrf.mxu0
      %v1213 = vadd.f32 0.0, %v1212
      %1214 = vdwg.mxu0
      %v1215 = vadd.f32 %v1155, %v1192
      %v1216 = vadd.f32 %v1156, %v1195
      %v1217 = vadd.f32 %v1157, %v1198
      %v1218 = vadd.f32 %v1158, %v1201
      %v1219 = vadd.f32 %v1159, %v1204
      %v1220 = vadd.f32 %v1160, %v1207
      %v1221 = vadd.f32 %v1161, %v1210
      %v1222 = vadd.f32 %v1162, %v1213
      %v1223 = vld [vmem:[%s213] sm:$0x1]
      %v1225 = vperm.slane %v1223, 0
      %v1227 = vadd.f32 %v1215, %v1225
      %v1228 = vadd.f32 %v1216, %v1225
      %v1229 = vadd.f32 %v1217, %v1225
      %v1230 = vadd.f32 %v1218, %v1225
      %v1231 = vadd.f32 %v1219, %v1225
      %v1232 = vadd.f32 %v1220, %v1225
      %v1233 = vadd.f32 %v1221, %v1225
      %v1234 = vadd.f32 %v1222, %v1225
      %1235 = vst.msk [vmem:[%s221] sm:$0xff] %vm722, %v1227
      %1236 = vst.msk [vmem:[%s221 + $0x8] sm:$0xff] %vm722, %v1228
      %1237 = vst.msk [vmem:[%s221 + $0x10] sm:$0xff] %vm722, %v1229
      %1238 = vst.msk [vmem:[%s221 + $0x18] sm:$0xff] %vm722, %v1230
      %1239 = vst.msk [vmem:[%s221 + $0x20] sm:$0xff] %vm722, %v1231
      %1240 = vst.msk [vmem:[%s221 + $0x28] sm:$0xff] %vm722, %v1232
      %1241 = vst.msk [vmem:[%s221 + $0x30] sm:$0xff] %vm722, %v1233
      %1242 = vst.msk [vmem:[%s221 + $0x38] sm:$0xff] %vm722, %v1234
      %p1243 = scmp.lt.s32.totalorder %s18, 1
      %s1244 = scalar_select %p1243, %s18, 1
      %p1245 = scmp.lt.s32.totalorder %s19, 0
      %s1246 = scalar_select %p1245, %s19, 0
      %s1247 = smul.addr %s1244, 8
      %s1248 = sadd.s32 %s1246, %s1247
      %s1249 = smul.addr %s1248, 8
      %s1250 = scalar_lea.vmem %s3, %s1249
      // Predicated region
      $region37: #{tpu_custom_call.1} parent=31 // pred_check
        %p1251 = pneg %p124
      $region38: #{tpu_custom_call.1} parent=31 // pred_check_branch
        %1253 = sbr.rel (%p1251) target = $region40
      $region39: #{tpu_custom_call.1} parent=31 // pred_region
        _
      $region40: #{tpu_custom_call.1} parent=31 // pred_fallthru
        _
    $region32: #{tpu_custom_call.1} parent=5 // pred_fallthru
      _
    %p1254 = scmp.le.s32.totalorder 2, %s9
    // Predicated region
    $region41: #{tpu_custom_call.1} parent=5 // pred_check
      %p1255 = pneg %p1254
    $region42: #{tpu_custom_call.1} parent=5 // pred_check_branch
      %1257 = sbr.rel (%p1255) target = $region44
    $region43: #{tpu_custom_call.1} parent=5 // pred_region
      %s1258 = ssub.s32 %s9, 2
      // Predicated region
      $region45: #{tpu_custom_call.1} parent=43 // pred_check
        %p1259 = pneg %p130
      $region46: #{tpu_custom_call.1} parent=43 // pred_check_branch
        %1261 = sbr.rel (%p1259) target = $region48
      $region47: #{tpu_custom_call.1} parent=43 // pred_region
        %p1262 = scmp.lt.s32.totalorder %s20, 1
        %s1263 = scalar_select %p1262, %s20, 1
        %p1264 = scmp.lt.s32.totalorder %s21, 0
        %s1265 = scalar_select %p1264, %s21, 0
        %s1266 = smul.addr %s1263, 8
        %s1267 = sadd.s32 %s1265, %s1266
        %s1268 = smul.addr %s1267, 8
        %s1269 = scalar_lea.vmem %s3, %s1268
      $region48: #{tpu_custom_call.1} parent=43 // pred_fallthru
        _
    $region44: #{tpu_custom_call.1} parent=5 // pred_fallthru
      _
  $region6: #{tpu_custom_call.1} parent=0 // loop_footer
    %s13 = sadd.s32 1, %s9
  $region7: #{tpu_custom_call.1} parent=0 // loop_footer_branch
    %8 = sbr.rel target = $region3
  $region8: #{tpu_custom_call.1} parent=0 // loop_exit
    _

</llo_original>
